<compile_context>
chip_gen: v7x
topology: tpu7x:2x2x1
jax: 0.10.0
libtpu: 0.0.40
codegen_flags: <defaults>
</compile_context>

<pallas_src>
import jax
import jax.numpy as jnp
from jax.experimental import pallas as pl
from jax.experimental.pallas import tpu as pltpu


def _net_kernel(xT_ref, w1_ref, b1_ref, w2_ref, b2_ref, oT_ref):
    xT = xT_ref[...]          # [F, TN]  batch on lanes (lane-dense)
    w1 = w1_ref[...]          # [H, F]
    w2 = w2_ref[...]          # [O, H]

    # ---- Layer 1: hT = sigmoid(W1 @ xT + b1) -------------------------------
    # K = n_feature = 2 is degenerate: F broadcast mul-adds on the VPU beat an
    # MXU push + result-FIFO pop round trip, and keep everything lane-dense.
    n_feature = xT.shape[0]
    h = w1[:, 0:1] * xT[0:1, :]                      # [H, TN]
    for k in range(1, n_feature):                    # static unroll (F known at trace time)
        h = h + w1[:, k:k + 1] * xT[k:k + 1, :]
    h = jax.nn.sigmoid(h + b1_ref[...])              # b1: [H, 1] broadcasts along lanes

    # ---- Layer 2: oT = W2 @ hT + b2 -----------------------------------------
    # A 10x2 contraction uses <0.1% of the MXU and is pure latency there; H
    # broadcast mul-adds on the otherwise-idle VPU finish in a few bundles.
    n_hidden = h.shape[0]
    o = w2[:, 0:1] * h[0:1, :]                       # [O, TN]
    for j in range(1, n_hidden):
        o = o + w2[:, j:j + 1] * h[j:j + 1, :]
    oT_ref[...] = (o + b2_ref[...]).astype(oT_ref.dtype)


def net_forward(x, w1, b1, w2, b2, *, batch_tile=8192):
    """Forward pass of Net.

    x:  [N, n_feature] float32
    w1: [n_hidden, n_feature], b1: [n_hidden]   (PyTorch nn.Linear convention)
    w2: [n_output, n_hidden],  b2: [n_output]
    returns [N, n_output] float32
    """
    n, f = x.shape
    n_hidden = w1.shape[0]
    n_output = w2.shape[0]

    # One-time host-side layout prep (single XLA ops, amortized by the kernel):
    #   * x flipped to [F, N] so the batch maps onto the 128-lane axis in-kernel.
    #   * biases shaped [H,1]/[O,1] to match the transposed layout.
    xT = jnp.asarray(x, jnp.float32).T                            # [F, N]
    w1f = jnp.asarray(w1, jnp.float32)                            # [H, F]
    w2f = jnp.asarray(w2, jnp.float32)                            # [O, H]
    b1c = jnp.asarray(b1, jnp.float32).reshape(n_hidden, 1)       # [H, 1]
    b2c = jnp.asarray(b2, jnp.float32).reshape(n_output, 1)       # [O, 1]

    # Keep the tile a multiple of 128 lanes.
    tn = max(128, (int(batch_tile) // 128) * 128)

    if n <= tn:
        # Whole problem is a handful of vregs of VMEM: no grid, no per-step
        # pipeline overhead at all.
        oT = pl.pallas_call(
            _net_kernel,
            out_shape=jax.ShapeDtypeStruct((n_output, n), jnp.float32),
            in_specs=[pl.BlockSpec(memory_space=pltpu.MemorySpace.VMEM)] * 5,
            out_specs=pl.BlockSpec(memory_space=pltpu.MemorySpace.VMEM),
        )(xT, w1f, b1c, w2f, b2c)
        return oT.T

    # Large batch: tile only over N (the lane axis); weights/biases stay resident
    # via constant index_maps. grid = cdiv(n, tn): the ragged last tile is handled
    # by Pallas OOB masking (no jnp.pad of x, no out[:n] slice -> no extra HBM
    # passes). n > tn here, so the grid has >= 2 steps and the "parallel" batch
    # axis actually feeds both v7x TensorCores.
    grid = (pl.cdiv(n, tn),)
    oT = pl.pallas_call(
        _net_kernel,
        out_shape=jax.ShapeDtypeStruct((n_output, n), jnp.float32),
        grid=grid,
        in_specs=[
            pl.BlockSpec((f, tn), lambda i: (0, i)),               # xT tile (lane-dense)
            pl.BlockSpec((n_hidden, f), lambda i: (0, 0)),         # W1 resident
            pl.BlockSpec((n_hidden, 1), lambda i: (0, 0)),         # b1 resident
            pl.BlockSpec((n_output, n_hidden), lambda i: (0, 0)),  # W2 resident
            pl.BlockSpec((n_output, 1), lambda i: (0, 0)),         # b2 resident
        ],
        out_specs=pl.BlockSpec((n_output, tn), lambda i: (0, i)),  # lane-dense store
        compiler_params=pltpu.CompilerParams(
            dimension_semantics=("parallel",),     # megacore split on v7x, no-op on v5e/v6e
            vmem_limit_bytes=32 * 1024 * 1024,     # explicit; actual use ~1-2 MiB/tile
        ),
    )(xT, w1f, b1c, w2f, b2c)
    return oT.T


def init_params(key, n_feature, n_hidden, n_output):
    """Deterministic init mimicking torch.nn.Linear default (uniform +/- 1/sqrt(fan_in))."""
    k1, k2, k3, k4 = jax.random.split(key, 4)
    bound1 = 1.0 / jnp.sqrt(n_feature)
    bound2 = 1.0 / jnp.sqrt(n_hidden)
    w1 = jax.random.uniform(k1, (n_hidden, n_feature), jnp.float32, -bound1, bound1)
    b1 = jax.random.uniform(k2, (n_hidden,), jnp.float32, -bound1, bound1)
    w2 = jax.random.uniform(k3, (n_output, n_hidden), jnp.float32, -bound2, bound2)
    b2 = jax.random.uniform(k4, (n_output,), jnp.float32, -bound2, bound2)
    return w1, b1, w2, b2


def _reference(x, w1, b1, w2, b2):
    return jnp.dot(jax.nn.sigmoid(jnp.dot(x, w1.T) + b1), w2.T) + b2


if __name__ == "__main__":
    key = jax.random.PRNGKey(0)
    k_data, k_big, k_params = jax.random.split(key, 3)

    # Matches the original script: Net(n_feature=2, n_hidden=10, n_output=2),
    # inputs = two gaussian blobs around +/-2 (100 points per class -> N=200).
    n_feature, n_hidden, n_output = 2, 10, 2
    n_per_class = 100
    ones = jnp.ones((n_per_class, n_feature), jnp.float32)
    noise = jax.random.normal(k_data, (2 * n_per_class, n_feature), jnp.float32)
    x = jnp.concatenate([2.0 * ones, -2.0 * ones], axis=0) + noise       # [200, 2]

    w1, b1, w2, b2 = init_params(k_params, n_feature, n_hidden, n_output)

    # --- small-batch path (no grid) -----------------------------------------
    out = jax.block_until_ready(net_forward(x, w1, b1, w2, b2))
    ref = _reference(x, w1, b1, w2, b2)
    assert out.shape == (2 * n_per_class, n_output)
    assert jnp.allclose(out, ref, atol=1e-5, rtol=1e-5)

    # --- tiled path (grid over batch lanes, ragged last tile, megacore split) -
    n_big = 20000                       # cdiv(20000, 8192) = 3 tiles, last one partial
    x_big = jax.random.normal(k_big, (n_big, n_feature), jnp.float32) * 2.0
    out_big = jax.block_until_ready(net_forward(x_big, w1, b1, w2, b2))
    ref_big = _reference(x_big, w1, b1, w2, b2)
    assert out_big.shape == (n_big, n_output)
    assert jnp.allclose(out_big, ref_big, atol=1e-5, rtol=1e-5)

    print("KERNEL_OK")
</pallas_src>

<mosaic_0001>
module attributes {stable_mosaic.version = 11 : i64} {
  func.func @_net_kernel(%arg0: memref<2x200xf32, #tpu.memory_space<vmem>>, %arg1: memref<10x2xf32, #tpu.memory_space<vmem>>, %arg2: memref<10x1xf32, #tpu.memory_space<vmem>>, %arg3: memref<2x10xf32, #tpu.memory_space<vmem>>, %arg4: memref<2x1xf32, #tpu.memory_space<vmem>>, %arg5: memref<2x200xf32, #tpu.memory_space<vmem>>) attributes {dimension_semantics = [], scalar_prefetch = 0 : i64, scratch_operands = 0 : i64, tpu.core_type = #tpu.core_type<tc>} {
    %c0 = arith.constant 0 : index
    %c0_0 = arith.constant 0 : index
    %0 = vector.load %arg0[%c0, %c0_0] : memref<2x200xf32, #tpu.memory_space<vmem>>, vector<2x200xf32>
    %c0_1 = arith.constant 0 : index
    %c0_2 = arith.constant 0 : index
    %1 = vector.load %arg1[%c0_1, %c0_2] : memref<10x2xf32, #tpu.memory_space<vmem>>, vector<10x2xf32>
    %c0_3 = arith.constant 0 : index
    %c0_4 = arith.constant 0 : index
    %2 = vector.load %arg3[%c0_3, %c0_4] : memref<2x10xf32, #tpu.memory_space<vmem>>, vector<2x10xf32>
    %3 = vector.extract_strided_slice %1 {offsets = [0, 0], sizes = [10, 1], strides = [1, 1]} : vector<10x2xf32> to vector<10x1xf32>
    %4 = vector.extract_strided_slice %0 {offsets = [0, 0], sizes = [1, 200], strides = [1, 1]} : vector<2x200xf32> to vector<1x200xf32>
    %5 = vector.broadcast %3 : vector<10x1xf32> to vector<10x200xf32>
    %6 = vector.broadcast %4 : vector<1x200xf32> to vector<10x200xf32>
    %7 = arith.mulf %5, %6 : vector<10x200xf32>
    %8 = vector.extract_strided_slice %1 {offsets = [0, 1], sizes = [10, 1], strides = [1, 1]} : vector<10x2xf32> to vector<10x1xf32>
    %9 = vector.extract_strided_slice %0 {offsets = [1, 0], sizes = [1, 200], strides = [1, 1]} : vector<2x200xf32> to vector<1x200xf32>
    %10 = vector.broadcast %8 : vector<10x1xf32> to vector<10x200xf32>
    %11 = vector.broadcast %9 : vector<1x200xf32> to vector<10x200xf32>
    %12 = arith.mulf %10, %11 : vector<10x200xf32>
    %13 = arith.addf %7, %12 : vector<10x200xf32>
    %c0_5 = arith.constant 0 : index
    %c0_6 = arith.constant 0 : index
    %14 = vector.load %arg2[%c0_5, %c0_6] : memref<10x1xf32, #tpu.memory_space<vmem>>, vector<10x1xf32>
    %15 = vector.broadcast %14 : vector<10x1xf32> to vector<10x200xf32>
    %16 = arith.addf %13, %15 : vector<10x200xf32>
    %17 = arith.negf %16 : vector<10x200xf32>
    %18 = math.exp %17 : vector<10x200xf32>
    %cst = arith.constant 1.000000e+00 : f32
    %19 = vector.broadcast %cst : f32 to vector<10x200xf32>
    %20 = arith.addf %19, %18 : vector<10x200xf32>
    %21 = arith.divf %19, %20 : vector<10x200xf32>
    %22 = vector.extract_strided_slice %2 {offsets = [0, 0], sizes = [2, 1], strides = [1, 1]} : vector<2x10xf32> to vector<2x1xf32>
    %23 = vector.extract_strided_slice %21 {offsets = [0, 0], sizes = [1, 200], strides = [1, 1]} : vector<10x200xf32> to vector<1x200xf32>
    %24 = vector.broadcast %22 : vector<2x1xf32> to vector<2x200xf32>
    %25 = vector.broadcast %23 : vector<1x200xf32> to vector<2x200xf32>
    %26 = arith.mulf %24, %25 : vector<2x200xf32>
    %27 = vector.extract_strided_slice %2 {offsets = [0, 1], sizes = [2, 1], strides = [1, 1]} : vector<2x10xf32> to vector<2x1xf32>
    %28 = vector.extract_strided_slice %21 {offsets = [1, 0], sizes = [1, 200], strides = [1, 1]} : vector<10x200xf32> to vector<1x200xf32>
    %29 = vector.broadcast %27 : vector<2x1xf32> to vector<2x200xf32>
    %30 = vector.broadcast %28 : vector<1x200xf32> to vector<2x200xf32>
    %31 = arith.mulf %29, %30 : vector<2x200xf32>
    %32 = arith.addf %26, %31 : vector<2x200xf32>
    %33 = vector.extract_strided_slice %2 {offsets = [0, 2], sizes = [2, 1], strides = [1, 1]} : vector<2x10xf32> to vector<2x1xf32>
    %34 = vector.extract_strided_slice %21 {offsets = [2, 0], sizes = [1, 200], strides = [1, 1]} : vector<10x200xf32> to vector<1x200xf32>
    %35 = vector.broadcast %33 : vector<2x1xf32> to vector<2x200xf32>
    %36 = vector.broadcast %34 : vector<1x200xf32> to vector<2x200xf32>
    %37 = arith.mulf %35, %36 : vector<2x200xf32>
    %38 = arith.addf %32, %37 : vector<2x200xf32>
    %39 = vector.extract_strided_slice %2 {offsets = [0, 3], sizes = [2, 1], strides = [1, 1]} : vector<2x10xf32> to vector<2x1xf32>
    %40 = vector.extract_strided_slice %21 {offsets = [3, 0], sizes = [1, 200], strides = [1, 1]} : vector<10x200xf32> to vector<1x200xf32>
    %41 = vector.broadcast %39 : vector<2x1xf32> to vector<2x200xf32>
    %42 = vector.broadcast %40 : vector<1x200xf32> to vector<2x200xf32>
    %43 = arith.mulf %41, %42 : vector<2x200xf32>
    %44 = arith.addf %38, %43 : vector<2x200xf32>
    %45 = vector.extract_strided_slice %2 {offsets = [0, 4], sizes = [2, 1], strides = [1, 1]} : vector<2x10xf32> to vector<2x1xf32>
    %46 = vector.extract_strided_slice %21 {offsets = [4, 0], sizes = [1, 200], strides = [1, 1]} : vector<10x200xf32> to vector<1x200xf32>
    %47 = vector.broadcast %45 : vector<2x1xf32> to vector<2x200xf32>
    %48 = vector.broadcast %46 : vector<1x200xf32> to vector<2x200xf32>
    %49 = arith.mulf %47, %48 : vector<2x200xf32>
    %50 = arith.addf %44, %49 : vector<2x200xf32>
    %51 = vector.extract_strided_slice %2 {offsets = [0, 5], sizes = [2, 1], strides = [1, 1]} : vector<2x10xf32> to vector<2x1xf32>
    %52 = vector.extract_strided_slice %21 {offsets = [5, 0], sizes = [1, 200], strides = [1, 1]} : vector<10x200xf32> to vector<1x200xf32>
    %53 = vector.broadcast %51 : vector<2x1xf32> to vector<2x200xf32>
    %54 = vector.broadcast %52 : vector<1x200xf32> to vector<2x200xf32>
    %55 = arith.mulf %53, %54 : vector<2x200xf32>
    %56 = arith.addf %50, %55 : vector<2x200xf32>
    %57 = vector.extract_strided_slice %2 {offsets = [0, 6], sizes = [2, 1], strides = [1, 1]} : vector<2x10xf32> to vector<2x1xf32>
    %58 = vector.extract_strided_slice %21 {offsets = [6, 0], sizes = [1, 200], strides = [1, 1]} : vector<10x200xf32> to vector<1x200xf32>
    %59 = vector.broadcast %57 : vector<2x1xf32> to vector<2x200xf32>
    %60 = vector.broadcast %58 : vector<1x200xf32> to vector<2x200xf32>
    %61 = arith.mulf %59, %60 : vector<2x200xf32>
    %62 = arith.addf %56, %61 : vector<2x200xf32>
    %63 = vector.extract_strided_slice %2 {offsets = [0, 7], sizes = [2, 1], strides = [1, 1]} : vector<2x10xf32> to vector<2x1xf32>
    %64 = vector.extract_strided_slice %21 {offsets = [7, 0], sizes = [1, 200], strides = [1, 1]} : vector<10x200xf32> to vector<1x200xf32>
    %65 = vector.broadcast %63 : vector<2x1xf32> to vector<2x200xf32>
    %66 = vector.broadcast %64 : vector<1x200xf32> to vector<2x200xf32>
    %67 = arith.mulf %65, %66 : vector<2x200xf32>
    %68 = arith.addf %62, %67 : vector<2x200xf32>
    %69 = vector.extract_strided_slice %2 {offsets = [0, 8], sizes = [2, 1], strides = [1, 1]} : vector<2x10xf32> to vector<2x1xf32>
    %70 = vector.extract_strided_slice %21 {offsets = [8, 0], sizes = [1, 200], strides = [1, 1]} : vector<10x200xf32> to vector<1x200xf32>
    %71 = vector.broadcast %69 : vector<2x1xf32> to vector<2x200xf32>
    %72 = vector.broadcast %70 : vector<1x200xf32> to vector<2x200xf32>
    %73 = arith.mulf %71, %72 : vector<2x200xf32>
    %74 = arith.addf %68, %73 : vector<2x200xf32>
    %75 = vector.extract_strided_slice %2 {offsets = [0, 9], sizes = [2, 1], strides = [1, 1]} : vector<2x10xf32> to vector<2x1xf32>
    %76 = vector.extract_strided_slice %21 {offsets = [9, 0], sizes = [1, 200], strides = [1, 1]} : vector<10x200xf32> to vector<1x200xf32>
    %77 = vector.broadcast %75 : vector<2x1xf32> to vector<2x200xf32>
    %78 = vector.broadcast %76 : vector<1x200xf32> to vector<2x200xf32>
    %79 = arith.mulf %77, %78 : vector<2x200xf32>
    %80 = arith.addf %74, %79 : vector<2x200xf32>
    %c0_7 = arith.constant 0 : index
    %c0_8 = arith.constant 0 : index
    %81 = vector.load %arg4[%c0_7, %c0_8] : memref<2x1xf32, #tpu.memory_space<vmem>>, vector<2x1xf32>
    %82 = vector.broadcast %81 : vector<2x1xf32> to vector<2x200xf32>
    %83 = arith.addf %80, %82 : vector<2x200xf32>
    %c0_9 = arith.constant 0 : index
    %c0_10 = arith.constant 0 : index
    %84 = vector.load %arg5[%c0_9, %c0_10] : memref<2x200xf32, #tpu.memory_space<vmem>>, vector<2x200xf32>
    tpu.vector_store %arg5[%c0_9, %c0_10], %83 {strides = array<i32>} : memref<2x200xf32, #tpu.memory_space<vmem>>, vector<2x200xf32>,
    return
  }
}

</mosaic_0001>

<llo_original>
// kernel: tpu_custom_call.1
$region0: #{tpu_custom_call.1}
  #allocation0 [shape = 'u32[]', space=smem, size = 0x4, offset = 0x4, fixed_abs, tag = 'smem constant byte address 0x4 - core index']
  #allocation1 [shape = 'u32[144,128]{1,0:T(1,128)}', space=vmem, size = 0x12000, scoped, tag = 'internal scratch']
  %s0 = inlined_call_operand.vmem [shape: f32[2,200], index: 0, kind: input, shape index: {}]
  %s1 = inlined_call_operand.vmem [shape: f32[10,2], index: 1, kind: input, shape index: {}]
  %s2 = inlined_call_operand.vmem [shape: f32[10,1], index: 2, kind: input, shape index: {}]
  %s3 = inlined_call_operand.vmem [shape: f32[2,10], index: 3, kind: input, shape index: {}]
  %s4 = inlined_call_operand.vmem [shape: f32[2,1], index: 4, kind: input, shape index: {}]
  %s5 = inlined_call_operand.hbm [shape: f32[2,200], index: 5, kind: output, shape index: {}]
  %s6 = sld [smem:[#allocation0]]
  $region30: #{tpu_custom_call.1} parent=0
    _
  %s8 = ssub.s32 1, %s6
  %s9 = scalar_select 0, %s8, %s6
  $region1: #{tpu_custom_call.1} parent=0
    #allocation2 [shape = 'u8[2048]{0}', space=vmem, size = 0x800, scoped, tag = 'output window, operand 0, single buffered']
    #allocation3 [shape = 's32[1]{0}', space=sflag, size = 0x4, scoped, tag = 'scoped memory for tpu_custom_call.1']
    %10 = vsyncpa [#allocation3], 0
    // Predicated region
    $region2: #{tpu_custom_call.1} parent=1 // pred_check
      _
    $region3: #{tpu_custom_call.1} parent=1 // pred_check_branch
      %12 = sbr.rel (0) target = $region5
    $region4: #{tpu_custom_call.1} parent=1 // pred_region
      _
    $region5: #{tpu_custom_call.1} parent=1 // pred_fallthru
      _
    // Predicated region
    $region6: #{tpu_custom_call.1} parent=1 // pred_check
      _
    $region7: #{tpu_custom_call.1} parent=1 // pred_check_branch
      %14 = sbr.rel (0) target = $region9
    $region8: #{tpu_custom_call.1} parent=1 // pred_region
      _
    $region9: #{tpu_custom_call.1} parent=1 // pred_fallthru
      _
    // Predicated region
    $region10: #{tpu_custom_call.1} parent=1 // pred_check
      _
    $region11: #{tpu_custom_call.1} parent=1 // pred_check_branch
      %16 = sbr.rel (0) target = $region13
    $region12: #{tpu_custom_call.1} parent=1 // pred_region
      _
    $region13: #{tpu_custom_call.1} parent=1 // pred_fallthru
      _
    // Predicated region
    $region14: #{tpu_custom_call.1} parent=1 // pred_check
      _
    $region15: #{tpu_custom_call.1} parent=1 // pred_check_branch
      %18 = sbr.rel (0) target = $region17
    $region16: #{tpu_custom_call.1} parent=1 // pred_region
      _
    $region17: #{tpu_custom_call.1} parent=1 // pred_fallthru
      _
    // Predicated region
    $region18: #{tpu_custom_call.1} parent=1 // pred_check
      _
    $region19: #{tpu_custom_call.1} parent=1 // pred_check_branch
      %20 = sbr.rel (0) target = $region21
    $region20: #{tpu_custom_call.1} parent=1 // pred_region
      _
    $region21: #{tpu_custom_call.1} parent=1 // pred_fallthru
      _
    %v21 = vld [vmem:[%s0] sm:$0xf]
    %v22 = vld [vmem:[%s1] sm:$0xff]
    %v23 = vld [vmem:[%s1 + $0x8] sm:$0x3]
    %v24 = vld [vmem:[%s3] sm:$0x3]
    %26 = vset.pattern.permute.xlu0 0
    %27 = vperm.xlu0 %26, %v22
    %v28 = vpop.permute.xlu0 %27
    %31 = vset.pattern.permute.xlu0 0
    %32 = vperm.xlu0 %31, %v23
    %v33 = vpop.permute.xlu0 %32
    %v36 = vlaneseq
    %v37 = vshrl.u32 %v36, 7
    %v38 = vsub.s32 0, %v37
    %v39 = vrot.slane %v21, %v38
    %v40 = vlaneseq
    %v41 = vshrl.u32 %v40, 7
    %v42 = vsub.s32 2, %v41
    %v43 = vrot.slane %v21, %v42
    %v46 = vlaneseq
    %v47 = vshrl.u32 %v46, 7
    %v48 = vsub.s32 0, %v47
    %v49 = vrot.slane %v39, %v48
    %v50 = vlaneseq
    %v51 = vshrl.u32 %v50, 7
    %v52 = vsub.s32 0, %v51
    %v53 = vrot.slane %v43, %v52
    %v54 = vmul.f32 %v28, %v49
    %v55 = vmul.f32 %v28, %v53
    %v56 = vmul.f32 %v33, %v49
    %v57 = vmul.f32 %v33, %v53
    %58 = vset.pattern.permute.xlu0 1
    %59 = vperm.xlu0 %58, %v22
    %v60 = vpop.permute.xlu0 %59
    %62 = vset.pattern.permute.xlu0 1
    %63 = vperm.xlu0 %62, %v23
    %v64 = vpop.permute.xlu0 %63
    %v66 = vlaneseq
    %v67 = vshrl.u32 %v66, 7
    %v68 = vsub.s32 1, %v67
    %v69 = vrot.slane %v21, %v68
    %v70 = vlaneseq
    %v71 = vshrl.u32 %v70, 7
    %v72 = vsub.s32 3, %v71
    %v73 = vrot.slane %v21, %v72
    %v76 = vlaneseq
    %v77 = vshrl.u32 %v76, 7
    %v78 = vsub.s32 1, %v77
    %v79 = vrot.slane %v69, %v78
    %v80 = vlaneseq
    %v81 = vshrl.u32 %v80, 7
    %v82 = vsub.s32 1, %v81
    %v83 = vrot.slane %v73, %v82
    %v84 = vmul.f32 %v60, %v79
    %v85 = vmul.f32 %v60, %v83
    %v86 = vmul.f32 %v64, %v79
    %v87 = vmul.f32 %v64, %v83
    %v88 = vadd.f32 %v54, %v84
    %v89 = vadd.f32 %v55, %v85
    %v90 = vadd.f32 %v56, %v86
    %v91 = vadd.f32 %v57, %v87
    %v92 = vld [vmem:[%s2] sm:$0xff]
    %v93 = vld [vmem:[%s2 + $0x8] sm:$0x3]
    %95 = vset.pattern.permute.xlu0 0
    %96 = vperm.xlu0 %95, %v92
    %v97 = vpop.permute.xlu0 %96
    %100 = vset.pattern.permute.xlu0 0
    %101 = vperm.xlu0 %100, %v93
    %v102 = vpop.permute.xlu0 %101
    %v104 = vadd.f32 %v88, %v97
    %v105 = vadd.f32 %v89, %v97
    %v106 = vadd.f32 %v90, %v102
    %v107 = vadd.f32 %v91, %v102
    %v108 = vxor.u32 %v104, 2147483648
    %v109 = vxor.u32 %v105, 2147483648
    %v110 = vxor.u32 %v106, 2147483648
    %v111 = vxor.u32 %v107, 2147483648
    %v112 = vmul.f32 %v108, 1.442695
    %v113 = vpow.pop %v112
    %v114 = vmul.f32 %v109, 1.442695
    %v115 = vpow.pop %v114
    %v116 = vmul.f32 %v110, 1.442695
    %v117 = vpow.pop %v116
    %v118 = vmul.f32 %v111, 1.442695
    %v119 = vpow.pop %v118
    %v120 = vadd.f32 %v113, 1.0
    %v121 = vadd.f32 %v115, 1.0
    %v122 = vadd.f32 %v117, 1.0
    %v123 = vadd.f32 %v119, 1.0
    %v124 = vrcp.pop %v120
    %v125 = vmul.f32 1.0, %v124
    %v126 = vrcp.pop %v121
    %v127 = vmul.f32 1.0, %v126
    %v128 = vrcp.pop %v122
    %v129 = vmul.f32 1.0, %v128
    %v130 = vrcp.pop %v123
    %v131 = vmul.f32 1.0, %v130
    %133 = vset.pattern.permute.xlu0 0
    %134 = vperm.xlu0 %133, %v24
    %v135 = vpop.permute.xlu0 %134
    %v137 = vlaneseq
    %v138 = vshrl.u32 %v137, 7
    %v139 = vsub.s32 0, %v138
    %v140 = vrot.slane %v125, %v139
    %v141 = vlaneseq
    %v142 = vshrl.u32 %v141, 7
    %v143 = vsub.s32 0, %v142
    %v144 = vrot.slane %v127, %v143
    %v145 = vmul.f32 %v135, %v140
    %v146 = vmul.f32 %v135, %v144
    %147 = vset.pattern.permute.xlu0 1
    %148 = vperm.xlu0 %147, %v24
    %v149 = vpop.permute.xlu0 %148
    %v151 = vlaneseq
    %v152 = vshrl.u32 %v151, 7
    %v153 = vsub.s32 1, %v152
    %v154 = vrot.slane %v125, %v153
    %v155 = vlaneseq
    %v156 = vshrl.u32 %v155, 7
    %v157 = vsub.s32 1, %v156
    %v158 = vrot.slane %v127, %v157
    %v159 = vmul.f32 %v149, %v154
    %v160 = vmul.f32 %v149, %v158
    %v161 = vadd.f32 %v145, %v159
    %v162 = vadd.f32 %v146, %v160
    %163 = vset.pattern.permute.xlu0 2
    %164 = vperm.xlu0 %163, %v24
    %v165 = vpop.permute.xlu0 %164
    %v167 = vlaneseq
    %v168 = vshrl.u32 %v167, 7
    %v169 = vsub.s32 2, %v168
    %v170 = vrot.slane %v125, %v169
    %v171 = vlaneseq
    %v172 = vshrl.u32 %v171, 7
    %v173 = vsub.s32 2, %v172
    %v174 = vrot.slane %v127, %v173
    %v175 = vmul.f32 %v165, %v170
    %v176 = vmul.f32 %v165, %v174
    %v177 = vadd.f32 %v161, %v175
    %v178 = vadd.f32 %v162, %v176
    %179 = vset.pattern.permute.xlu0 3
    %180 = vperm.xlu0 %179, %v24
    %v181 = vpop.permute.xlu0 %180
    %v183 = vlaneseq
    %v184 = vshrl.u32 %v183, 7
    %v185 = vsub.s32 3, %v184
    %v186 = vrot.slane %v125, %v185
    %v187 = vlaneseq
    %v188 = vshrl.u32 %v187, 7
    %v189 = vsub.s32 3, %v188
    %v190 = vrot.slane %v127, %v189
    %v191 = vmul.f32 %v181, %v186
    %v192 = vmul.f32 %v181, %v190
    %v193 = vadd.f32 %v177, %v191
    %v194 = vadd.f32 %v178, %v192
    %195 = vset.pattern.permute.xlu0 4
    %196 = vperm.xlu0 %195, %v24
    %v197 = vpop.permute.xlu0 %196
    %v199 = vlaneseq
    %v200 = vshrl.u32 %v199, 7
    %v201 = vsub.s32 4, %v200
    %v202 = vrot.slane %v125, %v201
    %v203 = vlaneseq
    %v204 = vshrl.u32 %v203, 7
    %v205 = vsub.s32 4, %v204
    %v206 = vrot.slane %v127, %v205
    %v207 = vmul.f32 %v197, %v202
    %v208 = vmul.f32 %v197, %v206
    %v209 = vadd.f32 %v193, %v207
    %v210 = vadd.f32 %v194, %v208
    %211 = vset.pattern.permute.xlu0 5
    %212 = vperm.xlu0 %211, %v24
    %v213 = vpop.permute.xlu0 %212
    %v215 = vlaneseq
    %v216 = vshrl.u32 %v215, 7
    %v217 = vsub.s32 5, %v216
    %v218 = vrot.slane %v125, %v217
    %v219 = vlaneseq
    %v220 = vshrl.u32 %v219, 7
    %v221 = vsub.s32 5, %v220
    %v222 = vrot.slane %v127, %v221
    %v223 = vmul.f32 %v213, %v218
    %v224 = vmul.f32 %v213, %v222
    %v225 = vadd.f32 %v209, %v223
    %v226 = vadd.f32 %v210, %v224
    %227 = vset.pattern.permute.xlu0 6
    %228 = vperm.xlu0 %227, %v24
    %v229 = vpop.permute.xlu0 %228
    %v231 = vlaneseq
    %v232 = vshrl.u32 %v231, 7
    %v233 = vsub.s32 6, %v232
    %v234 = vrot.slane %v125, %v233
    %v235 = vlaneseq
    %v236 = vshrl.u32 %v235, 7
    %v237 = vsub.s32 6, %v236
    %v238 = vrot.slane %v127, %v237
    %v239 = vmul.f32 %v229, %v234
    %v240 = vmul.f32 %v229, %v238
    %v241 = vadd.f32 %v225, %v239
    %v242 = vadd.f32 %v226, %v240
    %243 = vset.pattern.permute.xlu0 7
    %244 = vperm.xlu0 %243, %v24
    %v245 = vpop.permute.xlu0 %244
    %v247 = vlaneseq
    %v248 = vshrl.u32 %v247, 7
    %v249 = vsub.s32 7, %v248
    %v250 = vrot.slane %v125, %v249
    %v251 = vlaneseq
    %v252 = vshrl.u32 %v251, 7
    %v253 = vsub.s32 7, %v252
    %v254 = vrot.slane %v127, %v253
    %v255 = vmul.f32 %v245, %v250
    %v256 = vmul.f32 %v245, %v254
    %v257 = vadd.f32 %v241, %v255
    %v258 = vadd.f32 %v242, %v256
    %259 = vset.pattern.permute.xlu0 8
    %260 = vperm.xlu0 %259, %v24
    %v261 = vpop.permute.xlu0 %260
    %v263 = vlaneseq
    %v264 = vshrl.u32 %v263, 7
    %v265 = vsub.s32 0, %v264
    %v266 = vrot.slane %v129, %v265
    %v267 = vlaneseq
    %v268 = vshrl.u32 %v267, 7
    %v269 = vsub.s32 0, %v268
    %v270 = vrot.slane %v131, %v269
    %v271 = vmul.f32 %v261, %v266
    %v272 = vmul.f32 %v261, %v270
    %v273 = vadd.f32 %v257, %v271
    %v274 = vadd.f32 %v258, %v272
    %275 = vset.pattern.permute.xlu0 9
    %276 = vperm.xlu0 %275, %v24
    %v277 = vpop.permute.xlu0 %276
    %v279 = vlaneseq
    %v280 = vshrl.u32 %v279, 7
    %v281 = vsub.s32 1, %v280
    %v282 = vrot.slane %v129, %v281
    %v283 = vlaneseq
    %v284 = vshrl.u32 %v283, 7
    %v285 = vsub.s32 1, %v284
    %v286 = vrot.slane %v131, %v285
    %v287 = vmul.f32 %v277, %v282
    %v288 = vmul.f32 %v277, %v286
    %v289 = vadd.f32 %v273, %v287
    %v290 = vadd.f32 %v274, %v288
    %v291 = vld [vmem:[%s4] sm:$0x3]
    %293 = vset.pattern.permute.xlu0 0
    %294 = vperm.xlu0 %293, %v291
    %v295 = vpop.permute.xlu0 %294
    %v297 = vadd.f32 %v289, %v295
    %v298 = vadd.f32 %v290, %v295
    %v301 = vcombine.low %v297, %v298
    %v303 = vunpack.c.l.s4 1983009808
    %v304 = vunpack.c.0.s8 %v303
    %v305 = vlaneseq
    %v306 = vshrl.u32 %v305, 7
    %v307 = vsub.s32 %v304, %v306
    %v308 = vrot.slane %v301, %v307
    %vm310 = vcmask 1041408
    %vm311 = vcmask 584706
    %vm312 = vmor %vm311, %vm310
    %313 = vst.msk [vmem:[#allocation2] sm:$0xf] %vm312, %v308
    // Predicated region
    $region22: #{tpu_custom_call.1} parent=1 // pred_check
      _
    $region23: #{tpu_custom_call.1} parent=1 // pred_check_branch
      %315 = sbr.rel (0) target = $region25
    $region24: #{tpu_custom_call.1} parent=1 // pred_region
      %s317 = ssub.s32 64, 64
      %318 = vsyncadd [#allocation3], %s317
      %s320 = sshll.u32 [#allocation2], 4
      %s321 = int_to_ptr.vmem [resolvable:$true] %s320
      %323 = dma.vmem_to_hbm [thread:$0]  %s321, 64, %s5, [#allocation3]
    $region25: #{tpu_custom_call.1} parent=1 // pred_fallthru
      _
    // Predicated region
    $region26: #{tpu_custom_call.1} parent=1 // pred_check
      _
    $region27: #{tpu_custom_call.1} parent=1 // pred_check_branch
      %325 = sbr.rel (0) target = $region29
    $region28: #{tpu_custom_call.1} parent=1 // pred_region
      %326 = dma.done [#allocation3], 64
    $region29: #{tpu_custom_call.1} parent=1 // pred_fallthru
      _
    %327 = vsyncpa [#allocation3], 1

</llo_original>
